<compile_context>
chip_gen: v7x
topology: tpu7x:2x2x1
jax: 0.10.0
libtpu: 0.0.40
codegen_flags: <defaults>
</compile_context>

<pallas_src>
import functools
import math

import jax
import jax.numpy as jnp
import numpy as np
from jax.experimental import pallas as pl
from jax.experimental.pallas import tpu as pltpu

MAX_LEN = 100
OFFSETS = (2016.0, 288.0, 12.0)        # applied to rows [0,12), [12,24), [24,36)

# ~1 MiB output blocks already reach ~85%+ of the HBM store roofline; larger blocks buy
# ~1% and only consume VMEM headroom (v7x has 64 MiB physical).
_TARGET_BLOCK_BYTES = 1 * 1024 * 1024
_VMEM_LIMIT_BYTES = 32 * 1024 * 1024   # 2x out-block + 2x pe-block <= 4 MiB << 32 MiB


def _build_pe_table(embed_dim, max_len=MAX_LEN):
    """Host-side construction of the sinusoidal buffer, identical to PyTorch __init__."""
    assert embed_dim % 2 == 0, "embed_dim must be even (same latent requirement as PyTorch)"
    pe = np.zeros((max_len, embed_dim), np.float32)
    position = np.arange(max_len, dtype=np.float32)[:, None]
    div_term = np.exp(
        np.arange(0, embed_dim, 2, dtype=np.float32) * -(math.log(10000.0) / embed_dim)
    ).astype(np.float32)
    for i, off in enumerate(OFFSETS):
        rows = slice(i * 12, (i + 1) * 12)
        pe[rows, 0::2] = np.sin((position[rows] + off) * div_term)
        pe[rows, 1::2] = np.cos((position[rows] + off) * div_term)
    return pe


@functools.lru_cache(maxsize=1)
def _num_tensorcores():
    """Best-effort TensorCore count per device: v7x / v4 megacore -> 2, v5e / v6e -> 1."""
    try:
        info = pltpu.get_tpu_info()
        for name in ("num_cores", "num_cores_per_chip", "cores_per_chip", "tensorcore_count"):
            val = getattr(info, name, None)
            if isinstance(val, int) and val >= 1:
                return val
    except Exception:
        pass
    try:
        dev = jax.devices()[0]
        for name in ("num_cores", "core_count"):
            val = getattr(dev, name, None)
            if isinstance(val, int) and val >= 1:
                return val
        kind = (getattr(dev, "device_kind", "") or "").lower()
        if "v7" in kind or "7x" in kind or "v4" in kind:
            return 2
    except Exception:
        pass
    return 1


def _choose_tiles(B, T, ND, num_cores):
    """Pick (batch-block bb, lane-block ndb) so each output block is ~_TARGET_BLOCK_BYTES,
    lane-dense, and there are >= num_cores 'parallel' grid steps on megacore chips only."""
    itemsize = 4
    per_batch = T * ND * itemsize
    if per_batch <= _TARGET_BLOCK_BYTES or ND % 128 != 0 or ND <= 128:
        # Group whole batch elements per block; (bb, T, ND) is a contiguous slab of
        # bb*T flattened rows, so this is equivalent to row-flattened tiling.
        bb = max(1, min(B, _TARGET_BLOCK_BYTES // max(per_batch, 1)))
        if num_cores > 1:                      # keep >= num_cores steps only on megacore
            bb = min(bb, max(1, pl.cdiv(B, num_cores)))
        ndb = ND
    else:
        # One batch element alone exceeds the budget: split the lane axis in
        # 128-multiples so stores stay unmasked / lane-dense.
        bb = 1
        ndb = max(128, (_TARGET_BLOCK_BYTES // (T * itemsize)) // 128 * 128)
        ndb = min(ndb, ND)
    nb = pl.cdiv(B, bb)
    nl = pl.cdiv(ND, ndb)
    # Megacore chip but only a single block (e.g. B == 1): split lanes so both TCs store.
    if num_cores > 1 and nb * nl < num_cores and ndb == ND and ND % (128 * num_cores) == 0:
        ndb = ND // num_cores
        nl = num_cores
    return bb, ndb, nb, nl


def pe_broadcast_kernel(pe_ref, o_ref):
    # pe_ref: (T, ndb) sinusoidal table block (same block every step -> stays resident)
    # o_ref : (bb, T, ndb) output tile -> pure broadcast + lane-dense store
    o_ref[...] = jnp.broadcast_to(pe_ref[...][None, :, :], o_ref.shape)


@functools.lru_cache(maxsize=None)
def _pe_table_device(T, N, D):
    """(T, N*D) lane-dense table: pe_flat[t, n*D + d] == pe[t, d] (the 'expand' over N).
    Built once on host, uploaded once, cached per shape."""
    pe = _build_pe_table(D)[:T]                    # (T, D)
    return jnp.asarray(np.tile(pe, (1, N)))        # (T, N*D)


@functools.lru_cache(maxsize=None)
def _pe_expand_fn(B, T, N, D):
    """Build (once per shape) a jitted callable: (T, N*D) table -> (B, T, N, D) output."""
    ND = N * D
    bb, ndb, nb, nl = _choose_tiles(B, T, ND, _num_tensorcores())

    call = pl.pallas_call(
        pe_broadcast_kernel,
        out_shape=jax.ShapeDtypeStruct((B, T, ND), jnp.float32),
        grid=(nb, nl),
        in_specs=[pl.BlockSpec((T, ndb), lambda i, j: (0, j))],
        out_specs=pl.BlockSpec((bb, T, ndb), lambda i, j: (i, 0, j)),
        compiler_params=pltpu.CompilerParams(
            dimension_semantics=("parallel", "parallel"),
            vmem_limit_bytes=_VMEM_LIMIT_BYTES,
        ),
    )

    def fn(pe_flat):
        # Splitting the trailing dim N*D -> (N, D) keeps the row-major layout: free.
        return call(pe_flat).reshape(B, T, N, D)

    return jax.jit(fn)


def positional_encoding(x):
    """Forward pass of PositionalEncoding: pe broadcast to x.shape (float32)."""
    B, T, N, D = x.shape
    assert T <= MAX_LEN, "sequence length exceeds max_len"
    # Only x's shape is used (matches the PyTorch forward, which ignores x's values).
    return _pe_expand_fn(B, T, N, D)(_pe_table_device(T, N, D))


def reference(x):
    """Pure numpy re-implementation of the PyTorch module for verification."""
    B, T, N, D = x.shape
    pe = _build_pe_table(D)
    return np.broadcast_to(pe[None, :T, None, :], (B, T, N, D)).astype(np.float32)


if __name__ == "__main__":
    key = jax.random.PRNGKey(0)
    # x: (batch=2, seq=8, spatial=4, embed_dim=32) — only shape/dtype of x matter.
    x = jax.random.normal(key, (2, 8, 4, 32), dtype=jnp.float32)

    out = positional_encoding(x)
    out = jax.block_until_ready(out)

    ref = reference(np.asarray(x))
    assert out.shape == x.shape and out.dtype == jnp.float32
    np.testing.assert_allclose(np.asarray(out), ref, rtol=1e-5, atol=1e-5)
    print("KERNEL_OK")
</pallas_src>

<mosaic_0001>
module attributes {stable_mosaic.version = 11 : i64} {
  func.func @pe_broadcast_kernel(%arg0: i32, %arg1: i32, %arg2: memref<8x128xf32, #tpu.memory_space<vmem>>, %arg3: memref<2x8x128xf32, #tpu.memory_space<vmem>>) attributes {dimension_semantics = [#tpu.dimension_semantics<parallel>, #tpu.dimension_semantics<parallel>], iteration_bounds = array<i64: 1, 1>, scalar_prefetch = 0 : i64, scratch_operands = 0 : i64, tpu.core_type = #tpu.core_type<tc>, window_params = [{transform_indices = @transform_0, window_bounds = array<i64: 8, 128>}, {transform_indices = @transform_1, window_bounds = array<i64: 2, 8, 128>}]} {
    %c0 = arith.constant 0 : index
    %c0_0 = arith.constant 0 : index
    %0 = vector.load %arg2[%c0, %c0_0] : memref<8x128xf32, #tpu.memory_space<vmem>>, vector<8x128xf32>
    %1 = vector.shape_cast %0 : vector<8x128xf32> to vector<1x8x128xf32>
    %2 = vector.shape_cast %1 : vector<1x8x128xf32> to vector<1x8x128xf32>
    %3 = vector.broadcast %2 : vector<1x8x128xf32> to vector<2x8x128xf32>
    %c0_1 = arith.constant 0 : index
    %c0_2 = arith.constant 0 : index
    %c0_3 = arith.constant 0 : index
    %4 = vector.load %arg3[%c0_1, %c0_2, %c0_3] : memref<2x8x128xf32, #tpu.memory_space<vmem>>, vector<2x8x128xf32>
    tpu.vector_store %arg3[%c0_1, %c0_2, %c0_3], %3 {strides = array<i32>} : memref<2x8x128xf32, #tpu.memory_space<vmem>>, vector<2x8x128xf32>,
    return
  }
  func.func @transform_0(%arg0: i32, %arg1: i32) -> (i32, i32) {
    %c0_i32 = arith.constant 0 : i32
    %c0_i32_0 = arith.constant 0 : i32
    return %c0_i32, %arg1 : i32, i32
  }
  func.func @transform_1(%arg0: i32, %arg1: i32) -> (i32, i32, i32) {
    %c0_i32 = arith.constant 0 : i32
    %c0_i32_0 = arith.constant 0 : i32
    return %arg0, %c0_i32, %arg1 : i32, i32, i32
  }
}

</mosaic_0001>

<llo_original>
// kernel: fn.1
$region0: #{fn.1}
  #allocation0 [shape = 'u32[]', space=smem, size = 0x4, offset = 0x4, fixed_abs, tag = 'smem constant byte address 0x4 - core index']
  #allocation1 [shape = 'u32[144,128]{1,0:T(1,128)}', space=vmem, size = 0x12000, scoped, tag = 'internal scratch']
  %s0 = inlined_call_operand.hbm [shape: f32[8,128], index: 0, kind: input, shape index: {}]
  %s1 = inlined_call_operand.vmem [shape: f32[2,8,128], index: 1, kind: output, shape index: {}]
  %s2 = sld [smem:[#allocation0]]
  $region18: #{fn.1} parent=0
    _
  %s4 = ssub.s32 1, %s2
  %s5 = scalar_select 0, %s4, %s2
  $region1: #{fn.1} parent=0
    #allocation2 [shape = 'u8[4096]{0}', space=vmem, size = 0x1000, scoped, tag = 'input window, operand 0, single buffered']
    #allocation3 [shape = 's32[1]{0}', space=sflag, size = 0x4, scoped, tag = 'scoped memory for fn.1']
    %6 = vsyncpa [#allocation3], 0
    // Predicated region
    $region2: #{fn.1} parent=1 // pred_check
      _
    $region3: #{fn.1} parent=1 // pred_check_branch
      %8 = sbr.rel (0) target = $region5
    $region4: #{fn.1} parent=1 // pred_region
      %s10 = ssub.s32 128, 128
      %11 = vsyncadd [#allocation3], %s10
      %s13 = sshll.u32 [#allocation2], 4
      %s14 = int_to_ptr.vmem [resolvable:$true] %s13
      %16 = dma.hbm_to_vmem [thread:$0]  %s0, 128, %s14, [#allocation3]
    $region5: #{fn.1} parent=1 // pred_fallthru
      _
    // Predicated region
    $region6: #{fn.1} parent=1 // pred_check
      _
    $region7: #{fn.1} parent=1 // pred_check_branch
      %18 = sbr.rel (0) target = $region9
    $region8: #{fn.1} parent=1 // pred_region
      %19 = dma.done [#allocation3], 128
    $region9: #{fn.1} parent=1 // pred_fallthru
      _
    %v20 = vld [vmem:[#allocation2] sm:$0xff]
    %21 = vst [vmem:[%s1] sm:$0xff] %v20
    %22 = vst [vmem:[%s1 + $0x8] sm:$0xff] %v20
    // Predicated region
    $region10: #{fn.1} parent=1 // pred_check
      _
    $region11: #{fn.1} parent=1 // pred_check_branch
      %24 = sbr.rel (0) target = $region13
    $region12: #{fn.1} parent=1 // pred_region
      _
    $region13: #{fn.1} parent=1 // pred_fallthru
      _
    // Predicated region
    $region14: #{fn.1} parent=1 // pred_check
      _
    $region15: #{fn.1} parent=1 // pred_check_branch
      %26 = sbr.rel (0) target = $region17
    $region16: #{fn.1} parent=1 // pred_region
      _
    $region17: #{fn.1} parent=1 // pred_fallthru
      _
    %27 = vsyncpa [#allocation3], 1

</llo_original>
